<compile_context>
chip_gen: v6e
topology: v6e:2x2x1
jax: 0.10.0
libtpu: 0.0.40
codegen_flags: <defaults>
</compile_context>

<pallas_src>
import jax
import jax.numpy as jnp
from jax.experimental import pallas as pl
from jax.experimental.pallas import tpu as pltpu

_LANES = 128                          # vreg lane width (fast axis)
_SUBLANES = 8                         # vreg sublane count (f32)
_TARGET_BLOCK_ROWS = 4096             # 4096 x 128 x 4B = 2 MiB per f32 block
_MIN_KERNEL_BYTES = 2 * 1024 * 1024   # below this, pure reshape (metadata only)


def _copy_kernel(x_ref, o_ref):
    # Identity copy of one lane-dense (block_rows, 128) tile through VMEM.
    o_ref[...] = x_ref[...]


def _pick_block_rows(rows: int) -> int:
    """Block row count: ~2 MiB cap, >= 2 grid steps when possible, 8-aligned."""
    if rows <= _SUBLANES:
        return rows  # full extent (exempt from the (8,128) divisibility rule)
    half = -(-rows // 2)                                   # ceil(rows / 2)
    half = -(-half // _SUBLANES) * _SUBLANES               # round up to mult of 8
    return max(_SUBLANES, min(_TARGET_BLOCK_ROWS, half))


def unflatten(x: jax.Array, z_dim: int, *,
              min_kernel_bytes: int = _MIN_KERNEL_BYTES) -> jax.Array:
    """Pallas equivalent of UnFlatten.forward: (B, ...) -> (B, z_dim, 1, 1).

    For small or non-128-divisible inputs this is a pure (free) reshape.
    For large, lane-dense inputs an identity-copy Pallas kernel is used as an
    explicit fusion anchor (set min_kernel_bytes=0 to force it).
    """
    B = x.shape[0]
    total = x.size
    if total != B * z_dim:
        raise ValueError(f"cannot view {x.shape} as ({B}, {z_dim}, 1, 1)")
    out_shape = (B, z_dim, 1, 1)
    nbytes = total * x.dtype.itemsize

    # Biggest win from the review: a view is metadata-only, so skip the kernel
    # entirely unless it's large enough to be worth a roofline copy AND can be
    # presented as a lane-dense (rows, 128) slab (full-width vst stores).
    if total % _LANES != 0 or nbytes < min_kernel_bytes:
        return x.reshape(out_shape)

    rows = total // _LANES
    slab = x.reshape(rows, _LANES)
    block_rows = _pick_block_rows(rows)
    grid = (pl.cdiv(rows, block_rows),)   # partial last block is masked by Pallas

    y2d = pl.pallas_call(
        _copy_kernel,
        out_shape=jax.ShapeDtypeStruct(slab.shape, slab.dtype),
        grid=grid,
        in_specs=[pl.BlockSpec((block_rows, _LANES), lambda i: (i, 0))],
        out_specs=pl.BlockSpec((block_rows, _LANES), lambda i: (i, 0)),
        compiler_params=pltpu.CompilerParams(
            # Row-grid axis is embarrassingly parallel -> shard across the two
            # TensorCores on v7x; near-neutral on single-TC v5e/v6e.
            dimension_semantics=("parallel",),
        ),
        cost_estimate=pl.CostEstimate(
            flops=0, transcendentals=0, bytes_accessed=2 * nbytes),
    )(slab)

    # Glue: metadata-only reshape to NCHW (B, z_dim, 1, 1).
    return y2d.reshape(out_shape)


if __name__ == "__main__":
    key = jax.random.PRNGKey(0)

    # 1) Typical small VAE-latent shape (B=2, z_dim=32): takes the bypass path
    #    (pure reshape, no kernel, zero HBM traffic) — the review's top fix.
    B1, z1 = 2, 32
    x1 = jax.random.normal(key, (B1, z1), dtype=jnp.float32)
    y1 = jax.block_until_ready(unflatten(x1, z1))
    ref1 = x1.reshape(B1, z1, 1, 1)
    assert y1.shape == (B1, z1, 1, 1), y1.shape
    assert y1.dtype == x1.dtype
    assert jnp.array_equal(y1, ref1)

    # 2) Force the kernel path (fusion-anchor mode) on a lane-dense slab with a
    #    NON-divisible row count: total=160000 -> rows=1250, block_rows=632,
    #    grid=(2,) with a masked partial last block (exercises the cdiv grid).
    B2, z2 = 2500, 64
    x2 = jax.random.normal(jax.random.PRNGKey(0), (B2, z2), dtype=jnp.float32)
    y2 = jax.block_until_ready(unflatten(x2, z2, min_kernel_bytes=0))
    ref2 = x2.reshape(B2, z2, 1, 1)
    assert y2.shape == (B2, z2, 1, 1), y2.shape
    assert y2.dtype == x2.dtype
    assert jnp.array_equal(y2, ref2)

    # 3) Same kernel path under jit (how it would run inside a VAE forward).
    unflatten_jit = jax.jit(
        lambda a: unflatten(a, z2, min_kernel_bytes=0))
    y3 = jax.block_until_ready(unflatten_jit(x2))
    assert jnp.array_equal(y3, ref2)

    print("KERNEL_OK")
</pallas_src>

<mosaic_0001>
module attributes {stable_mosaic.version = 11 : i64} {
  func.func @_copy_kernel(%arg0: i32, %arg1: memref<632x128xf32, #tpu.memory_space<vmem>>, %arg2: memref<632x128xf32, #tpu.memory_space<vmem>>) attributes {dimension_semantics = [#tpu.dimension_semantics<parallel>], iteration_bounds = array<i64: 2>, scalar_prefetch = 0 : i64, scratch_operands = 0 : i64, tpu.core_type = #tpu.core_type<tc>, window_params = [{transform_indices = @transform_0, window_bounds = array<i64: 632, 128>}, {transform_indices = @transform_1, window_bounds = array<i64: 632, 128>}]} {
    %c0 = arith.constant 0 : index
    %c0_0 = arith.constant 0 : index
    %0 = vector.load %arg1[%c0, %c0_0] : memref<632x128xf32, #tpu.memory_space<vmem>>, vector<632x128xf32>
    %c0_1 = arith.constant 0 : index
    %c0_2 = arith.constant 0 : index
    %1 = vector.load %arg2[%c0_1, %c0_2] : memref<632x128xf32, #tpu.memory_space<vmem>>, vector<632x128xf32>
    tpu.vector_store %arg2[%c0_1, %c0_2], %0 {strides = array<i32>} : memref<632x128xf32, #tpu.memory_space<vmem>>, vector<632x128xf32>,
    return
  }
  func.func @transform_0(%arg0: i32) -> (i32, i32) {
    %c0_i32 = arith.constant 0 : i32
    %c0_i32_0 = arith.constant 0 : i32
    return %arg0, %c0_i32 : i32, i32
  }
  func.func @transform_1(%arg0: i32) -> (i32, i32) {
    %c0_i32 = arith.constant 0 : i32
    %c0_i32_0 = arith.constant 0 : i32
    return %arg0, %c0_i32 : i32, i32
  }
}

</mosaic_0001>

<llo_original>
// kernel: tpu_custom_call.1
$region0: #{tpu_custom_call.1}
  #allocation0 [shape = 'u32[]', space=smem, size = 0x4, offset = 0x4, fixed_abs, tag = 'smem constant byte address 0x4 - core index']
  #allocation1 [shape = 'u32[144,128]{1,0:T(1,128)}', space=vmem, size = 0x12000, scoped, tag = 'internal scratch']
  %s0 = inlined_call_operand.hbm [shape: f32[1250,128], index: 0, kind: input, shape index: {}]
  %s1 = inlined_call_operand.hbm [shape: f32[1250,128], index: 1, kind: output, shape index: {}]
  %s2 = sld [smem:[#allocation0]]
  $region41: #{tpu_custom_call.1} parent=0
    _
  %s4 = ssub.s32 1, %s2
  %s5 = scalar_select 0, %s4, %s2
  $region1: #{tpu_custom_call.1} parent=0
    #allocation2 [shape = 'u8[647168]{0}', space=vmem, size = 0x9e000, scoped, tag = 'input window, operand 0']
    #allocation3 [shape = 's32[2]{0}', space=sflag, size = 0x8, scoped, tag = 'scoped memory for tpu_custom_call.1']
    #allocation4 [shape = 's32[2]{0}', space=sflag, size = 0x8, scoped, tag = 'scoped memory for tpu_custom_call.1']
    #allocation5 [shape = 'u8[647168]{0}', space=vmem, size = 0x9e000, scoped, tag = 'output window, operand 0']
    %6 = vsyncpa [#allocation3], 0
    %s7 = scalar_lea.sflag [#allocation3], 1
    %8 = vsyncpa %s7, 0
    %9 = vsyncpa [#allocation4], 0
    %s10 = scalar_lea.sflag [#allocation4], 1
    %11 = vsyncpa %s10, 0
    loop: start=0, step=1, limit=4
    $region2: #{tpu_custom_call.1} parent=1 // loop_pre_header
      _
    $region3: #{tpu_custom_call.1} parent=1 // loop_header
      %s13 = sphi 0, %s17
      %p14 = scmp.ge.s32.totalorder %s13, 4
      %s23 = sphi 0, %s25
      %s26 = sphi 0, %s23
      %s27 = sphi 0, %s26
      %s43 = sphi 0, %s27
      %s49 = sphi 0, %s51
      %s52 = sphi 0, %s49
      %s53 = sphi 0, %s52
      %s69 = sphi 0, %s53
    $region4: #{tpu_custom_call.1} parent=1 // loop_header_branch
      %16 = sbr.rel (%p14) target = $region8
    $region5: #{tpu_custom_call.1} parent=1 // loop_body
      %s18 = ssub.s32 %s13, 1
      %s19 = ssub.s32 %s13, 2
      %s20 = sadd.s32 %s13, 1
      %s21 = ssub.s32 %s13, %s20
      %p22 = scmp.eq.s32.totalorder %s21, 0
      %s24 = sadd.s32 %s23, 1
      %s25 = scalar_select %p22, %s23, %s24
      %p28 = pneg %p22
      %p29 = scmp.eq.s32.totalorder %s13, 1
      %p30 = por %p28, %p29
      %p31 = scmp.ne.s32.totalorder %s23, %s26
      %p32 = scmp.eq.s32.totalorder %s13, 0
      %p33 = por %p31, %p32
      %p34 = scmp.ne.s32.totalorder %s23, %s26
      %p35 = scmp.eq.s32.totalorder %s18, 1
      %p36 = por %p34, %p35
      %p37 = scmp.ne.s32.totalorder %s26, %s27
      %p38 = scmp.eq.s32.totalorder %s18, 0
      %p39 = por %p37, %p38
      %p40 = scmp.ne.s32.totalorder %s26, %s27
      %p41 = scmp.eq.s32.totalorder %s19, 1
      %p42 = por %p40, %p41
      %p44 = scmp.ne.s32.totalorder %s27, %s43
      %p45 = scmp.eq.s32.totalorder %s19, 0
      %p46 = por %p44, %p45
      %s47 = ssub.s32 %s13, %s20
      %p48 = scmp.eq.s32.totalorder %s47, 0
      %s50 = sadd.s32 %s49, 1
      %s51 = scalar_select %p48, %s49, %s50
      %p54 = pneg %p48
      %p55 = scmp.eq.s32.totalorder %s13, 1
      %p56 = por %p54, %p55
      %p57 = scmp.ne.s32.totalorder %s49, %s52
      %p58 = scmp.eq.s32.totalorder %s13, 0
      %p59 = por %p57, %p58
      %p60 = scmp.ne.s32.totalorder %s49, %s52
      %p61 = scmp.eq.s32.totalorder %s18, 1
      %p62 = por %p60, %p61
      %p63 = scmp.ne.s32.totalorder %s52, %s53
      %p64 = scmp.eq.s32.totalorder %s18, 0
      %p65 = por %p63, %p64
      %p66 = scmp.ne.s32.totalorder %s52, %s53
      %p67 = scmp.eq.s32.totalorder %s19, 1
      %p68 = por %p66, %p67
      %p70 = scmp.ne.s32.totalorder %s53, %s69
      %p71 = scmp.eq.s32.totalorder %s19, 0
      %p72 = por %p70, %p71
      %p73 = scmp.le.s32.totalorder 1, %s13
      %p74 = scmp.lt.s32.totalorder %s13, 3
      %p75 = pnand %p73, %p74
      %p76 = pneg %p75
      // Predicated region
      $region9: #{tpu_custom_call.1} parent=5 // pred_check
        _
      $region10: #{tpu_custom_call.1} parent=5 // pred_check_branch
        %78 = sbr.rel (%p75) target = $region12
      $region11: #{tpu_custom_call.1} parent=5 // pred_region
        %s79 = ssub.s32 %s13, 1
      $region12: #{tpu_custom_call.1} parent=5 // pred_fallthru
        _
      %p80 = scmp.lt.s32.totalorder %s13, 2
      // Predicated region
      $region13: #{tpu_custom_call.1} parent=5 // pred_check
        %p81 = pneg %p80
      $region14: #{tpu_custom_call.1} parent=5 // pred_check_branch
        %83 = sbr.rel (%p81) target = $region16
      $region15: #{tpu_custom_call.1} parent=5 // pred_region
        // Predicated region
        $region17: #{tpu_custom_call.1} parent=15 // pred_check
          %p84 = pneg %p33
        $region18: #{tpu_custom_call.1} parent=15 // pred_check_branch
          %86 = sbr.rel (%p84) target = $region20
        $region19: #{tpu_custom_call.1} parent=15 // pred_region
          %s87 = sand.u32 %s23, 1
          %s88 = scalar_lea.sflag [#allocation3], %s87
          %s89 = sand.u32 %s23, 1
          %s90 = smul.addr %s89, 632
          %s91 = scalar_lea.vmem [#allocation2], %s90
          %s92 = smul.u32 79, %s13
          %s93 = ssub.s32 157, %s92
          %p94 = scmp.lt.s32.totalorder %s93, 79
          %s95 = scalar_select %p94, %s93, 79
          %s96 = smul.u32 128, %s95
          %s98 = ssub.s32 10112, %s96
          %99 = vsyncadd %s88, %s98
          %p100 = scmp.ne.s32.totalorder 0, %s96
          %s101 = smul.addr %s92, 128
          %s102 = scalar_lea.hbm %s0, %s101
          %s103 = smul.u32 8, %s95
          %s104 = sshll.u32 %s91, 4
          %s105 = int_to_ptr.vmem [resolvable:$true] %s104
          %s106 = sshll.u32 %s103, 4
          %110 = dma.hbm_to_vmem [thread:$0]  (%p100), %s102, %s106, %s105, %s88, 128, 128, 8
        $region20: #{tpu_custom_call.1} parent=15 // pred_fallthru
          _
      $region16: #{tpu_custom_call.1} parent=5 // pred_fallthru
        _
      %p111 = scmp.le.s32.totalorder 1, %s13
      %p112 = scmp.lt.s32.totalorder %s13, 3
      %p113 = pnand %p111, %p112
      %p114 = pneg %p113
      // Predicated region
      $region21: #{tpu_custom_call.1} parent=5 // pred_check
        _
      $region22: #{tpu_custom_call.1} parent=5 // pred_check_branch
        %116 = sbr.rel (%p113) target = $region24
      $region23: #{tpu_custom_call.1} parent=5 // pred_region
        %s117 = ssub.s32 %s13, 1
        %s118 = sand.u32 %s26, 1
        %s119 = scalar_lea.sflag [#allocation3], %s118
        %s120 = sand.u32 %s26, 1
        %s121 = smul.addr %s120, 632
        %s122 = scalar_lea.vmem [#allocation2], %s121
        // Predicated region
        $region25: #{tpu_custom_call.1} parent=23 // pred_check
          %p123 = pneg %p39
        $region26: #{tpu_custom_call.1} parent=23 // pred_check_branch
          %125 = sbr.rel (%p123) target = $region28
        $region27: #{tpu_custom_call.1} parent=23 // pred_region
          %126 = dma.done %s119, 10112
        $region28: #{tpu_custom_call.1} parent=23 // pred_fallthru
          _
        %s127 = sand.u32 %s26, 1
        %s128 = scalar_lea.sflag [#allocation3], %s127
        %s129 = sand.u32 %s26, 1
        %s130 = smul.addr %s129, 632
        %s131 = scalar_lea.vmem [#allocation2], %s130
        %p132 = pneg %p39
        %p133 = pneg %p36
        %p134 = pneg %p65
        %p135 = pneg %p62
        %s136 = sand.u32 %s52, 1
        %s137 = scalar_lea.sflag [#allocation4], %s136
        %s138 = sand.u32 %s52, 1
        %s139 = smul.addr %s138, 632
        %s140 = scalar_lea.vmem [#allocation5], %s139
        %s141 = smul.u32 79, %s18
        %s142 = ssub.s32 157, %s141
        %p143 = scmp.lt.s32.totalorder %s142, 79
        %s144 = scalar_select %p143, %s142, 79
        %s145 = smul.u32 128, %s144
        %s146 = smul.u32 79, %s18
        %s147 = ssub.s32 157, %s146
        %p148 = scmp.lt.s32.totalorder %s147, 79
        %s149 = scalar_select %p148, %s147, 79
        %s150 = smul.u32 128, %s149
        %v151 = vld [vmem:[%s122] sm:$0xff]
        %v152 = vld [vmem:[%s122 + $0x8] sm:$0xff]
        %v153 = vld [vmem:[%s122 + $0x10] sm:$0xff]
        %v154 = vld [vmem:[%s122 + $0x18] sm:$0xff]
        %v155 = vld [vmem:[%s122 + $0x20] sm:$0xff]
        %v156 = vld [vmem:[%s122 + $0x28] sm:$0xff]
        %v157 = vld [vmem:[%s122 + $0x30] sm:$0xff]
        %v158 = vld [vmem:[%s122 + $0x38] sm:$0xff]
        %v159 = vld [vmem:[%s122 + $0x40] sm:$0xff]
        %v160 = vld [vmem:[%s122 + $0x48] sm:$0xff]
        %v161 = vld [vmem:[%s122 + $0x50] sm:$0xff]
        %v162 = vld [vmem:[%s122 + $0x58] sm:$0xff]
        %v163 = vld [vmem:[%s122 + $0x60] sm:$0xff]
        %v164 = vld [vmem:[%s122 + $0x68] sm:$0xff]
        %v165 = vld [vmem:[%s122 + $0x70] sm:$0xff]
        %v166 = vld [vmem:[%s122 + $0x78] sm:$0xff]
        %v167 = vld [vmem:[%s122 + $0x80] sm:$0xff]
        %v168 = vld [vmem:[%s122 + $0x88] sm:$0xff]
        %v169 = vld [vmem:[%s122 + $0x90] sm:$0xff]
        %v170 = vld [vmem:[%s122 + $0x98] sm:$0xff]
        %v171 = vld [vmem:[%s122 + $0xa0] sm:$0xff]
        %v172 = vld [vmem:[%s122 + $0xa8] sm:$0xff]
        %v173 = vld [vmem:[%s122 + $0xb0] sm:$0xff]
        %v174 = vld [vmem:[%s122 + $0xb8] sm:$0xff]
        %v175 = vld [vmem:[%s122 + $0xc0] sm:$0xff]
        %v176 = vld [vmem:[%s122 + $0xc8] sm:$0xff]
        %v177 = vld [vmem:[%s122 + $0xd0] sm:$0xff]
        %v178 = vld [vmem:[%s122 + $0xd8] sm:$0xff]
        %v179 = vld [vmem:[%s122 + $0xe0] sm:$0xff]
        %v180 = vld [vmem:[%s122 + $0xe8] sm:$0xff]
        %v181 = vld [vmem:[%s122 + $0xf0] sm:$0xff]
        %v182 = vld [vmem:[%s122 + $0xf8] sm:$0xff]
        %v183 = vld [vmem:[%s122 + $0x100] sm:$0xff]
        %v184 = vld [vmem:[%s122 + $0x108] sm:$0xff]
        %v185 = vld [vmem:[%s122 + $0x110] sm:$0xff]
        %v186 = vld [vmem:[%s122 + $0x118] sm:$0xff]
        %v187 = vld [vmem:[%s122 + $0x120] sm:$0xff]
        %v188 = vld [vmem:[%s122 + $0x128] sm:$0xff]
        %v189 = vld [vmem:[%s122 + $0x130] sm:$0xff]
        %v190 = vld [vmem:[%s122 + $0x138] sm:$0xff]
        %v191 = vld [vmem:[%s122 + $0x140] sm:$0xff]
        %v192 = vld [vmem:[%s122 + $0x148] sm:$0xff]
        %v193 = vld [vmem:[%s122 + $0x150] sm:$0xff]
        %v194 = vld [vmem:[%s122 + $0x158] sm:$0xff]
        %v195 = vld [vmem:[%s122 + $0x160] sm:$0xff]
        %v196 = vld [vmem:[%s122 + $0x168] sm:$0xff]
        %v197 = vld [vmem:[%s122 + $0x170] sm:$0xff]
        %v198 = vld [vmem:[%s122 + $0x178] sm:$0xff]
        %v199 = vld [vmem:[%s122 + $0x180] sm:$0xff]
        %v200 = vld [vmem:[%s122 + $0x188] sm:$0xff]
        %v201 = vld [vmem:[%s122 + $0x190] sm:$0xff]
        %v202 = vld [vmem:[%s122 + $0x198] sm:$0xff]
        %v203 = vld [vmem:[%s122 + $0x1a0] sm:$0xff]
        %v204 = vld [vmem:[%s122 + $0x1a8] sm:$0xff]
        %v205 = vld [vmem:[%s122 + $0x1b0] sm:$0xff]
        %v206 = vld [vmem:[%s122 + $0x1b8] sm:$0xff]
        %v207 = vld [vmem:[%s122 + $0x1c0] sm:$0xff]
        %v208 = vld [vmem:[%s122 + $0x1c8] sm:$0xff]
        %v209 = vld [vmem:[%s122 + $0x1d0] sm:$0xff]
        %v210 = vld [vmem:[%s122 + $0x1d8] sm:$0xff]
        %v211 = vld [vmem:[%s122 + $0x1e0] sm:$0xff]
        %v212 = vld [vmem:[%s122 + $0x1e8] sm:$0xff]
        %v213 = vld [vmem:[%s122 + $0x1f0] sm:$0xff]
        %v214 = vld [vmem:[%s122 + $0x1f8] sm:$0xff]
        %v215 = vld [vmem:[%s122 + $0x200] sm:$0xff]
        %v216 = vld [vmem:[%s122 + $0x208] sm:$0xff]
        %v217 = vld [vmem:[%s122 + $0x210] sm:$0xff]
        %v218 = vld [vmem:[%s122 + $0x218] sm:$0xff]
        %v219 = vld [vmem:[%s122 + $0x220] sm:$0xff]
        %v220 = vld [vmem:[%s122 + $0x228] sm:$0xff]
        %v221 = vld [vmem:[%s122 + $0x230] sm:$0xff]
        %v222 = vld [vmem:[%s122 + $0x238] sm:$0xff]
        %v223 = vld [vmem:[%s122 + $0x240] sm:$0xff]
        %v224 = vld [vmem:[%s122 + $0x248] sm:$0xff]
        %v225 = vld [vmem:[%s122 + $0x250] sm:$0xff]
        %v226 = vld [vmem:[%s122 + $0x258] sm:$0xff]
        %v227 = vld [vmem:[%s122 + $0x260] sm:$0xff]
        %v228 = vld [vmem:[%s122 + $0x268] sm:$0xff]
        %v229 = vld [vmem:[%s122 + $0x270] sm:$0xff]
        %230 = vst [vmem:[%s140] sm:$0xff] %v151
        %231 = vst [vmem:[%s140 + $0x8] sm:$0xff] %v152
        %232 = vst [vmem:[%s140 + $0x10] sm:$0xff] %v153
        %233 = vst [vmem:[%s140 + $0x18] sm:$0xff] %v154
        %234 = vst [vmem:[%s140 + $0x20] sm:$0xff] %v155
        %235 = vst [vmem:[%s140 + $0x28] sm:$0xff] %v156
        %236 = vst [vmem:[%s140 + $0x30] sm:$0xff] %v157
        %237 = vst [vmem:[%s140 + $0x38] sm:$0xff] %v158
        %238 = vst [vmem:[%s140 + $0x40] sm:$0xff] %v159
        %239 = vst [vmem:[%s140 + $0x48] sm:$0xff] %v160
        %240 = vst [vmem:[%s140 + $0x50] sm:$0xff] %v161
        %241 = vst [vmem:[%s140 + $0x58] sm:$0xff] %v162
        %242 = vst [vmem:[%s140 + $0x60] sm:$0xff] %v163
        %243 = vst [vmem:[%s140 + $0x68] sm:$0xff] %v164
        %244 = vst [vmem:[%s140 + $0x70] sm:$0xff] %v165
        %245 = vst [vmem:[%s140 + $0x78] sm:$0xff] %v166
        %246 = vst [vmem:[%s140 + $0x80] sm:$0xff] %v167
        %247 = vst [vmem:[%s140 + $0x88] sm:$0xff] %v168
        %248 = vst [vmem:[%s140 + $0x90] sm:$0xff] %v169
        %249 = vst [vmem:[%s140 + $0x98] sm:$0xff] %v170
        %250 = vst [vmem:[%s140 + $0xa0] sm:$0xff] %v171
        %251 = vst [vmem:[%s140 + $0xa8] sm:$0xff] %v172
        %252 = vst [vmem:[%s140 + $0xb0] sm:$0xff] %v173
        %253 = vst [vmem:[%s140 + $0xb8] sm:$0xff] %v174
        %254 = vst [vmem:[%s140 + $0xc0] sm:$0xff] %v175
        %255 = vst [vmem:[%s140 + $0xc8] sm:$0xff] %v176
        %256 = vst [vmem:[%s140 + $0xd0] sm:$0xff] %v177
        %257 = vst [vmem:[%s140 + $0xd8] sm:$0xff] %v178
        %258 = vst [vmem:[%s140 + $0xe0] sm:$0xff] %v179
        %259 = vst [vmem:[%s140 + $0xe8] sm:$0xff] %v180
        %260 = vst [vmem:[%s140 + $0xf0] sm:$0xff] %v181
        %261 = vst [vmem:[%s140 + $0xf8] sm:$0xff] %v182
        %262 = vst [vmem:[%s140 + $0x100] sm:$0xff] %v183
        %263 = vst [vmem:[%s140 + $0x108] sm:$0xff] %v184
        %264 = vst [vmem:[%s140 + $0x110] sm:$0xff] %v185
        %265 = vst [vmem:[%s140 + $0x118] sm:$0xff] %v186
        %266 = vst [vmem:[%s140 + $0x120] sm:$0xff] %v187
        %267 = vst [vmem:[%s140 + $0x128] sm:$0xff] %v188
        %268 = vst [vmem:[%s140 + $0x130] sm:$0xff] %v189
        %269 = vst [vmem:[%s140 + $0x138] sm:$0xff] %v190
        %270 = vst [vmem:[%s140 + $0x140] sm:$0xff] %v191
        %271 = vst [vmem:[%s140 + $0x148] sm:$0xff] %v192
        %272 = vst [vmem:[%s140 + $0x150] sm:$0xff] %v193
        %273 = vst [vmem:[%s140 + $0x158] sm:$0xff] %v194
        %274 = vst [vmem:[%s140 + $0x160] sm:$0xff] %v195
        %275 = vst [vmem:[%s140 + $0x168] sm:$0xff] %v196
        %276 = vst [vmem:[%s140 + $0x170] sm:$0xff] %v197
        %277 = vst [vmem:[%s140 + $0x178] sm:$0xff] %v198
        %278 = vst [vmem:[%s140 + $0x180] sm:$0xff] %v199
        %279 = vst [vmem:[%s140 + $0x188] sm:$0xff] %v200
        %280 = vst [vmem:[%s140 + $0x190] sm:$0xff] %v201
        %281 = vst [vmem:[%s140 + $0x198] sm:$0xff] %v202
        %282 = vst [vmem:[%s140 + $0x1a0] sm:$0xff] %v203
        %283 = vst [vmem:[%s140 + $0x1a8] sm:$0xff] %v204
        %284 = vst [vmem:[%s140 + $0x1b0] sm:$0xff] %v205
        %285 = vst [vmem:[%s140 + $0x1b8] sm:$0xff] %v206
        %286 = vst [vmem:[%s140 + $0x1c0] sm:$0xff] %v207
        %287 = vst [vmem:[%s140 + $0x1c8] sm:$0xff] %v208
        %288 = vst [vmem:[%s140 + $0x1d0] sm:$0xff] %v209
        %289 = vst [vmem:[%s140 + $0x1d8] sm:$0xff] %v210
        %290 = vst [vmem:[%s140 + $0x1e0] sm:$0xff] %v211
        %291 = vst [vmem:[%s140 + $0x1e8] sm:$0xff] %v212
        %292 = vst [vmem:[%s140 + $0x1f0] sm:$0xff] %v213
        %293 = vst [vmem:[%s140 + $0x1f8] sm:$0xff] %v214
        %294 = vst [vmem:[%s140 + $0x200] sm:$0xff] %v215
        %295 = vst [vmem:[%s140 + $0x208] sm:$0xff] %v216
        %296 = vst [vmem:[%s140 + $0x210] sm:$0xff] %v217
        %297 = vst [vmem:[%s140 + $0x218] sm:$0xff] %v218
        %298 = vst [vmem:[%s140 + $0x220] sm:$0xff] %v219
        %299 = vst [vmem:[%s140 + $0x228] sm:$0xff] %v220
        %300 = vst [vmem:[%s140 + $0x230] sm:$0xff] %v221
        %301 = vst [vmem:[%s140 + $0x238] sm:$0xff] %v222
        %302 = vst [vmem:[%s140 + $0x240] sm:$0xff] %v223
        %303 = vst [vmem:[%s140 + $0x248] sm:$0xff] %v224
        %304 = vst [vmem:[%s140 + $0x250] sm:$0xff] %v225
        %305 = vst [vmem:[%s140 + $0x258] sm:$0xff] %v226
        %306 = vst [vmem:[%s140 + $0x260] sm:$0xff] %v227
        %307 = vst [vmem:[%s140 + $0x268] sm:$0xff] %v228
        %308 = vst [vmem:[%s140 + $0x270] sm:$0xff] %v229
        %s309 = sand.u32 %s52, 1
        %s310 = scalar_lea.sflag [#allocation4], %s309
        %s311 = sand.u32 %s52, 1
        %s312 = smul.addr %s311, 632
        %s313 = scalar_lea.vmem [#allocation5], %s312
        // Predicated region
        $region29: #{tpu_custom_call.1} parent=23 // pred_check
          %p314 = pneg %p62
        $region30: #{tpu_custom_call.1} parent=23 // pred_check_branch
          %316 = sbr.rel (%p314) target = $region32
        $region31: #{tpu_custom_call.1} parent=23 // pred_region
          %s317 = smul.u32 79, %s18
          %s318 = ssub.s32 157, %s317
          %p319 = scmp.lt.s32.totalorder %s318, 79
          %s320 = scalar_select %p319, %s318, 79
          %s321 = smul.u32 128, %s320
          %s323 = ssub.s32 10112, %s321
          %324 = vsyncadd %s310, %s323
          %p325 = scmp.ne.s32.totalorder 0, %s321
          %s326 = smul.addr %s317, 128
          %s327 = scalar_lea.hbm %s1, %s326
          %s328 = smul.u32 8, %s320
          %s329 = sshll.u32 %s313, 4
          %s330 = int_to_ptr.vmem [resolvable:$true] %s329
          %s331 = sshll.u32 %s328, 4
          %335 = dma.vmem_to_hbm [thread:$0]  (%p325), %s330, %s331, %s327, %s310, 128, 128, 8
        $region32: #{tpu_custom_call.1} parent=23 // pred_fallthru
          _
      $region24: #{tpu_custom_call.1} parent=5 // pred_fallthru
        _
      %p336 = scmp.le.s32.totalorder 2, %s13
      // Predicated region
      $region33: #{tpu_custom_call.1} parent=5 // pred_check
        %p337 = pneg %p336
      $region34: #{tpu_custom_call.1} parent=5 // pred_check_branch
        %339 = sbr.rel (%p337) target = $region36
      $region35: #{tpu_custom_call.1} parent=5 // pred_region
        %s340 = ssub.s32 %s13, 2
        // Predicated region
        $region37: #{tpu_custom_call.1} parent=35 // pred_check
          %p341 = pneg %p68
        $region38: #{tpu_custom_call.1} parent=35 // pred_check_branch
          %343 = sbr.rel (%p341) target = $region40
        $region39: #{tpu_custom_call.1} parent=35 // pred_region
          %s344 = sand.u32 %s53, 1
          %s345 = scalar_lea.sflag [#allocation4], %s344
          %s346 = sand.u32 %s53, 1
          %s347 = smul.addr %s346, 632
          %s348 = scalar_lea.vmem [#allocation5], %s347
          %349 = dma.done %s345, 10112
        $region40: #{tpu_custom_call.1} parent=35 // pred_fallthru
          _
      $region36: #{tpu_custom_call.1} parent=5 // pred_fallthru
        _
    $region6: #{tpu_custom_call.1} parent=1 // loop_footer
      %s17 = sadd.s32 1, %s13
    $region7: #{tpu_custom_call.1} parent=1 // loop_footer_branch
      %12 = sbr.rel target = $region3
    $region8: #{tpu_custom_call.1} parent=1 // loop_exit
      _
    %350 = vsyncpa [#allocation3], 1
    %s351 = scalar_lea.sflag [#allocation3], 1
    %352 = vsyncpa %s351, 1
    %353 = vsyncpa [#allocation4], 1
    %s354 = scalar_lea.sflag [#allocation4], 1
    %355 = vsyncpa %s354, 1

</llo_original>
